<compile_context>
chip_gen: v7x
topology: tpu7x:2x2x1
jax: 0.10.0
libtpu: 0.0.40
codegen_flags: <defaults>
</compile_context>

<pallas_src>
import math

import jax
import jax.numpy as jnp
from jax.experimental import pallas as pl
from jax.experimental.pallas import tpu as pltpu

_LANE_COLS = 1024        # lane-dense width for the flattened layout
_TILE_ROWS = 2048        # rows per grid step (20 MiB double-buffered at 1024 lanes)
_MIN_PALLAS_BYTES = 1 << 20   # below ~1 MiB total traffic, fused XLA wins
_MIN_GRID_STEPS = 4           # keep >=4 row steps so multi-TC chips shard the loop


def _rescale_kernel(mask_ref, out_ref):
    # Pure VPU hot path: int -> f32 cast, multiply by a Python-float immediate
    # (not a captured jnp constant), optional narrowing cast on the store.
    x = mask_ref[...].astype(jnp.float32) * (1.0 / 255.0)
    out_ref[...] = x.astype(out_ref.dtype)


def _round_up(x, m):
    return ((x + m - 1) // m) * m


def _choose_layout(total):
    """Lane-dense (rows, cols, pad) layout for a flat array of `total` elems."""
    for cols in (1024, 512, 256, 128):
        if total % cols == 0:
            return total // cols, cols, 0
    # Non-divisible sizes: pad up to a multiple of 1024 so stores stay unmasked.
    padded = _round_up(total, _LANE_COLS)
    return padded // _LANE_COLS, _LANE_COLS, padded - total


def mask_preprocess(mask, out_dtype=jnp.float32, *,
                    min_pallas_bytes=_MIN_PALLAS_BYTES):
    """Pallas equivalent of MaskInversionMaskPreprocess.forward.

    Accepts any-shape integer (or float) mask array; returns mask / 255 as
    float32 (or a narrower dtype such as bf16 via `out_dtype`).
    """
    mask = jnp.asarray(mask)
    orig_shape = mask.shape
    total = math.prod(orig_shape) if orig_shape else 1
    if total == 0:
        return jnp.zeros(orig_shape, out_dtype)

    in_bytes = jnp.dtype(mask.dtype).itemsize
    out_bytes = jnp.dtype(out_dtype).itemsize

    # Small-input bypass: custom-call / pipeline prologue overhead dominates.
    if total * (in_bytes + out_bytes) < min_pallas_bytes:
        return (mask.astype(jnp.float32) / 255.0).astype(out_dtype)

    rows, cols, pad = _choose_layout(total)

    flat = mask.reshape(-1)
    if pad:
        flat = jnp.pad(flat, (0, pad))
    flat = flat.reshape(rows, cols)

    # Row tile: full extent for short arrays, else a multiple of 8 sized so the
    # grid has at least _MIN_GRID_STEPS steps (lets v7x shard across 2 TCs),
    # capped at _TILE_ROWS to bound VMEM footprint.
    if rows <= 8 * _MIN_GRID_STEPS:
        tile_r = rows
    else:
        tile_r = min(_TILE_ROWS, _round_up(pl.cdiv(rows, _MIN_GRID_STEPS), 8))
    grid = (pl.cdiv(rows, tile_r),)

    out = pl.pallas_call(
        _rescale_kernel,
        out_shape=jax.ShapeDtypeStruct((rows, cols), out_dtype),
        grid=grid,
        in_specs=[pl.BlockSpec((tile_r, cols), lambda i: (i, 0))],
        out_specs=pl.BlockSpec((tile_r, cols), lambda i: (i, 0)),
        compiler_params=pltpu.CompilerParams(
            dimension_semantics=("parallel",),
            vmem_limit_bytes=48 << 20,
        ),
        cost_estimate=pl.CostEstimate(
            flops=rows * cols,
            transcendentals=0,
            bytes_accessed=rows * cols * (in_bytes + out_bytes),
        ),
    )(flat)

    out = out.reshape(-1)
    if pad:
        out = out[:total]
    return out.reshape(orig_shape)


if __name__ == "__main__":
    key = jax.random.PRNGKey(0)
    k1, k2 = jax.random.split(key)

    # Small NCHW mask: batch=2, channels=4, spatial=16x16, uint8 values 0..255.
    mask = jax.random.randint(k1, (2, 4, 16, 16), 0, 256, dtype=jnp.int32).astype(
        jnp.uint8
    )
    ref = mask.astype(jnp.float32) / 255.0

    # 1) Default routing (tiny input -> fused XLA bypass).
    result_bypass = jax.block_until_ready(mask_preprocess(mask))
    assert result_bypass.shape == mask.shape and result_bypass.dtype == jnp.float32
    assert bool(jnp.allclose(result_bypass, ref, atol=1e-6, rtol=1e-6))

    # 2) Force the Pallas path on the same input (exercises the kernel).
    result_pallas = jax.block_until_ready(mask_preprocess(mask, min_pallas_bytes=0))
    assert result_pallas.shape == mask.shape and result_pallas.dtype == jnp.float32
    assert bool(jnp.allclose(result_pallas, ref, atol=1e-6, rtol=1e-6))

    # 3) Non-128-divisible shape (exercises the pad-to-lane-dense path).
    odd = jax.random.randint(k2, (3, 5, 7), 0, 256, dtype=jnp.int32).astype(jnp.uint8)
    odd_ref = odd.astype(jnp.float32) / 255.0
    odd_out = jax.block_until_ready(mask_preprocess(odd, min_pallas_bytes=0))
    assert odd_out.shape == odd.shape and odd_out.dtype == jnp.float32
    assert bool(jnp.allclose(odd_out, odd_ref, atol=1e-6, rtol=1e-6))

    print("KERNEL_OK")
</pallas_src>

<mosaic_0001>
module attributes {stable_mosaic.version = 11 : i64} {
  func.func @_rescale_kernel(%arg0: i32, %arg1: memref<2x1024xi8, #tpu.memory_space<vmem>>, %arg2: memref<2x1024xf32, #tpu.memory_space<vmem>>) attributes {dimension_semantics = [#tpu.dimension_semantics<parallel>], iteration_bounds = array<i64: 1>, scalar_prefetch = 0 : i64, scratch_operands = 0 : i64, tpu.core_type = #tpu.core_type<tc>, window_params = [{transform_indices = @transform_0, window_bounds = array<i64: 2, 1024>}, {transform_indices = @transform_1, window_bounds = array<i64: 2, 1024>}]} {
    %c0 = arith.constant 0 : index
    %c0_0 = arith.constant 0 : index
    %0 = vector.load %arg1[%c0, %c0_0] : memref<2x1024xi8, #tpu.memory_space<vmem>>, vector<2x1024xi8>
    %1 = arith.uitofp %0 : vector<2x1024xi8> to vector<2x1024xf32>
    %cst = arith.constant 0.00392156886 : f32
    %2 = vector.broadcast %cst : f32 to vector<2x1024xf32>
    %3 = arith.mulf %1, %2 : vector<2x1024xf32>
    %c0_1 = arith.constant 0 : index
    %c0_2 = arith.constant 0 : index
    %4 = vector.load %arg2[%c0_1, %c0_2] : memref<2x1024xf32, #tpu.memory_space<vmem>>, vector<2x1024xf32>
    tpu.vector_store %arg2[%c0_1, %c0_2], %3 {strides = array<i32>} : memref<2x1024xf32, #tpu.memory_space<vmem>>, vector<2x1024xf32>,
    return
  }
  func.func @transform_0(%arg0: i32) -> (i32, i32) {
    %c0_i32 = arith.constant 0 : i32
    %c0_i32_0 = arith.constant 0 : i32
    return %arg0, %c0_i32 : i32, i32
  }
  func.func @transform_1(%arg0: i32) -> (i32, i32) {
    %c0_i32 = arith.constant 0 : i32
    %c0_i32_0 = arith.constant 0 : i32
    return %arg0, %c0_i32 : i32, i32
  }
}

</mosaic_0001>

<llo_original>
// kernel: tpu_custom_call.1
$region0: #{tpu_custom_call.1}
  #allocation0 [shape = 'u32[]', space=smem, size = 0x4, offset = 0x4, fixed_abs, tag = 'smem constant byte address 0x4 - core index']
  #allocation1 [shape = 'u32[144,128]{1,0:T(1,128)}', space=vmem, size = 0x12000, scoped, tag = 'internal scratch']
  %s0 = inlined_call_operand.hbm [shape: u8[2,1024], index: 0, kind: input, shape index: {}]
  %s1 = inlined_call_operand.hbm [shape: f32[2,1024], index: 1, kind: output, shape index: {}]
  %s2 = sld [smem:[#allocation0]]
  $region18: #{tpu_custom_call.1} parent=0
    _
  %s4 = ssub.s32 1, %s2
  %s5 = scalar_select 0, %s4, %s2
  $region1: #{tpu_custom_call.1} parent=0
    #allocation2 [shape = 'u8[4096]{0}', space=vmem, size = 0x1000, scoped, tag = 'input window, operand 0, single buffered']
    #allocation3 [shape = 's32[1]{0}', space=sflag, size = 0x4, scoped, tag = 'scoped memory for tpu_custom_call.1']
    #allocation4 [shape = 's32[1]{0}', space=sflag, size = 0x4, scoped, tag = 'scoped memory for tpu_custom_call.1']
    #allocation5 [shape = 'u8[8192]{0}', space=vmem, size = 0x2000, scoped, tag = 'output window, operand 0, single buffered']
    %6 = vsyncpa [#allocation3], 0
    %7 = vsyncpa [#allocation4], 0
    // Predicated region
    $region2: #{tpu_custom_call.1} parent=1 // pred_check
      _
    $region3: #{tpu_custom_call.1} parent=1 // pred_check_branch
      %9 = sbr.rel (0) target = $region5
    $region4: #{tpu_custom_call.1} parent=1 // pred_region
      %s11 = ssub.s32 128, 128
      %12 = vsyncadd [#allocation3], %s11
      %s14 = sshll.u32 [#allocation2], 4
      %s15 = int_to_ptr.vmem [resolvable:$true] %s14
      %17 = dma.hbm_to_vmem [thread:$0]  %s0, 128, %s15, [#allocation3]
    $region5: #{tpu_custom_call.1} parent=1 // pred_fallthru
      _
    // Predicated region
    $region6: #{tpu_custom_call.1} parent=1 // pred_check
      _
    $region7: #{tpu_custom_call.1} parent=1 // pred_check_branch
      %19 = sbr.rel (0) target = $region9
    $region8: #{tpu_custom_call.1} parent=1 // pred_region
      %20 = dma.done [#allocation3], 128
    $region9: #{tpu_custom_call.1} parent=1 // pred_fallthru
      _
    %v21 = vld [vmem:[#allocation2] sm:$0xff]
    %v22 = vunpack.c.0.s8 %v21
    %v23 = vunpack.c.1.s8 %v21
    %v24 = vunpack.c.2.s8 %v21
    %v25 = vunpack.c.3.s8 %v21
    %v26 = vand.u32 %v22, 255
    %v27 = vand.u32 %v23, 255
    %v28 = vand.u32 %v24, 255
    %v29 = vand.u32 %v25, 255
    %v30 = vcvt.s32.f32 %v26
    %v31 = vcvt.s32.f32 %v27
    %v32 = vcvt.s32.f32 %v28
    %v33 = vcvt.s32.f32 %v29
    %v34 = vmul.f32 %v30, 0.003921569
    %v35 = vmul.f32 %v31, 0.003921569
    %v36 = vmul.f32 %v32, 0.003921569
    %v37 = vmul.f32 %v33, 0.003921569
    %v43 = vunpack.c.l.s4 1983009808
    %v44 = vunpack.c.0.s8 %v43
    %v45 = vlaneseq
    %v46 = vshrl.u32 %v45, 7
    %v47 = vsub.s32 %v44, %v46
    %v48 = vrot.slane %v34, %v47
    %v50 = vunpack.c.l.s4 1983009808
    %v51 = vunpack.c.0.s8 %v50
    %v52 = vlaneseq
    %v53 = vshrl.u32 %v52, 7
    %v54 = vsub.s32 %v51, %v53
    %v55 = vrot.slane %v35, %v54
    %v56 = vcombine.low %v48, %v55
    %v58 = vunpack.c.l.s4 1983009808
    %v59 = vunpack.c.0.s8 %v58
    %v60 = vlaneseq
    %v61 = vshrl.u32 %v60, 7
    %v62 = vsub.s32 %v59, %v61
    %v63 = vrot.slane %v36, %v62
    %v65 = vunpack.c.l.s4 1983009808
    %v66 = vunpack.c.0.s8 %v65
    %v67 = vlaneseq
    %v68 = vshrl.u32 %v67, 7
    %v69 = vsub.s32 %v66, %v68
    %v70 = vrot.slane %v37, %v69
    %v71 = vcombine.low %v63, %v70
    %74 = vst [vmem:[#allocation5] sm:$0xff] %v56
    %75 = vst [vmem:[#allocation5 + $0x8] sm:$0xff] %v71
    // Predicated region
    $region10: #{tpu_custom_call.1} parent=1 // pred_check
      _
    $region11: #{tpu_custom_call.1} parent=1 // pred_check_branch
      %77 = sbr.rel (0) target = $region13
    $region12: #{tpu_custom_call.1} parent=1 // pred_region
      %s79 = ssub.s32 256, 256
      %80 = vsyncadd [#allocation4], %s79
      %s82 = sshll.u32 [#allocation5], 4
      %s83 = int_to_ptr.vmem [resolvable:$true] %s82
      %85 = dma.vmem_to_hbm [thread:$0]  %s83, 256, %s1, [#allocation4]
    $region13: #{tpu_custom_call.1} parent=1 // pred_fallthru
      _
    // Predicated region
    $region14: #{tpu_custom_call.1} parent=1 // pred_check
      _
    $region15: #{tpu_custom_call.1} parent=1 // pred_check_branch
      %87 = sbr.rel (0) target = $region17
    $region16: #{tpu_custom_call.1} parent=1 // pred_region
      %88 = dma.done [#allocation4], 256
    $region17: #{tpu_custom_call.1} parent=1 // pred_fallthru
      _
    %89 = vsyncpa [#allocation3], 1
    %90 = vsyncpa [#allocation4], 1

</llo_original>
